<compile_context>
chip_gen: v6e
topology: v6e:2x2x1
jax: 0.10.0
libtpu: 0.0.40
codegen_flags: <defaults>
</compile_context>

<pallas_src>
import functools

import jax
import jax.numpy as jnp
from jax.experimental import pallas as pl
from jax.experimental.pallas import tpu as pltpu


def _supports_single_buffered_consts():
    """Feature-detect pl.Buffered(1) without swallowing real compile errors."""
    if not hasattr(pl, "Buffered"):
        return False
    try:
        pl.BlockSpec((8, 128), lambda i: (0, 0), pipeline_mode=pl.Buffered(1))
    except Exception:
        return False
    return True


def _attn_pool_kernel(scale,
                      x_ref, pos0_ref, posr_ref,
                      wqkv_ref, bqkv_ref, wc_ref, bc_ref,
                      mask_ch_ref, mask_hc_ref,
                      out_ref):
    f32 = jnp.float32
    bf16 = jnp.bfloat16
    Bt, C, S = x_ref.shape              # x streamed in channel-major (native) layout
    S_pad = posr_ref.shape[0]           # spatial tokens padded to a multiple of 8

    # ---- token-major layout, built in VMEM (XLU transpose; no HBM pre-pass) ----
    x = x_ref[...].astype(f32)                                    # (Bt, C, S)
    if S_pad != S:
        x = jnp.concatenate(
            [x, jnp.zeros((Bt, C, S_pad - S), f32)], axis=-1)     # pad lane dim
    xt = jnp.transpose(x, (0, 2, 1))                              # (Bt, S_pad, C)

    # class ("mean") token over the *real* spatial positions + positional embeddings
    t0 = jnp.sum(xt, axis=1) * (1.0 / S) + pos0_ref[...]          # (Bt, C)
    # S_pad % 8 == 0 -> this reshape (and all reshapes below) is a free relayout
    tr = (xt + posr_ref[...][None]).reshape(Bt * S_pad, C)        # (Bt*S_pad, C)

    w = wqkv_ref[...]                                             # (C, 3C) bf16
    b = bqkv_ref[...]                                             # (1, 3C) f32

    # fused q/k/v projection of the class token: one (Bt, C) @ (C, 3C) matmul
    qkv0 = jnp.dot(t0.astype(bf16), w, preferred_element_type=f32) + b       # (Bt, 3C)
    q = qkv0[:, :C] * scale                                       # (Bt, C)
    k0 = qkv0[:, C:2 * C]                                         # (Bt, C)
    v0 = qkv0[:, 2 * C:]                                          # (Bt, C)

    # fused k/v projection of spatial tokens: one (Bt*S_pad, C) @ (C, 2C) matmul
    kv = jnp.dot(tr.astype(bf16), w[:, C:], preferred_element_type=f32) + b[:, C:]
    kr = kv[:, :C].reshape(Bt, S_pad, C)                          # (Bt, S_pad, C)
    vr = kv[:, C:].reshape(Bt, S_pad, C)                          # (Bt, S_pad, C)

    mask_ch = mask_ch_ref[...]                                    # (C, Hh) bf16, resident
    mask_hc = mask_hc_ref[...]                                    # (Hh, C) bf16, resident

    # per-head attention scores via segment-sum matmuls (bf16 in, f32 accumulate)
    # TODO(synk): on v6e/v7x these N~num_heads matmuls use <1/8 of the 256-wide MXU;
    # could become a (.., Hh, head_dim) reshape + XLU lane reduce if MXU-bound.
    s0 = jnp.dot((q * k0).astype(bf16), mask_ch,
                 preferred_element_type=f32)                      # (Bt, Hh)
    qk = (q[:, None, :] * kr).reshape(Bt * S_pad, C).astype(bf16)
    sr = jnp.dot(qk, mask_ch,
                 preferred_element_type=f32).reshape(Bt, S_pad, -1)  # (Bt, S_pad, Hh)

    if S_pad != S:
        # exclude padded key positions from the softmax
        kpos = jax.lax.broadcasted_iota(jnp.int32, (1, S_pad, 1), 1)
        sr = jnp.where(kpos < S, sr, -jnp.inf)

    # numerically stable softmax over the (1 + S) key positions (f32 math)
    m = jnp.maximum(jnp.max(sr, axis=1), s0)                      # (Bt, Hh)
    p0 = jnp.exp(s0 - m)                                          # (Bt, Hh)
    pr = jnp.exp(sr - m[:, None, :])                              # (Bt, S_pad, Hh)
    inv = pl.reciprocal(p0 + jnp.sum(pr, axis=1), approx=True)    # EUP
    p0 = p0 * inv
    pr = pr * inv[:, None, :]

    # weighted sum of values; expand per-head probs back to the feature dim
    pe0 = jnp.dot(p0.astype(bf16), mask_hc, preferred_element_type=f32)       # (Bt, C)
    per = jnp.dot(pr.reshape(Bt * S_pad, -1).astype(bf16), mask_hc,
                  preferred_element_type=f32).reshape(Bt, S_pad, C)           # (Bt, S_pad, C)
    o = pe0 * v0 + jnp.sum(per * vr, axis=1)                      # (Bt, C)

    # output projection (c_proj); O is padded to a lane-dense multiple of 128
    out = jnp.dot(o.astype(bf16), wc_ref[...], preferred_element_type=f32) + bc_ref[...]
    out_ref[0] = out.astype(out_ref.dtype)                        # (Bt, O_pad)


def attention_pool_2d(x_nchw, params, num_heads, batch_tile=None):
    N, C, H, W = x_nchw.shape
    S = H * W
    O = params["wc"].shape[0]
    head_dim = C // num_heads
    scale = float(head_dim) ** -0.5

    S_pad = -(-S // 8) * 8          # spatial tokens padded (in-kernel) to sublane multiple
    O_pad = -(-O // 128) * 128      # lane-dense output stores
    # TODO(synk): embed_dim (C) is left unpadded; real CLIP dims (1024/2048) are
    # already lane-aligned, and padding C would require reworking the head masks.

    # no activation pre-pass: contiguous reshape only; transpose/pad/cast in-kernel
    x_cs = x_nchw.reshape(N, C, S)

    pos = params["pos"].astype(jnp.float32)
    pos0, posr = pos[:1], pos[1:]                                  # (1, C), (S, C)
    if S_pad != S:
        posr = jnp.concatenate(
            [posr, jnp.zeros((S_pad - S, C), jnp.float32)], axis=0)

    # fused, bf16 projection weights (single resident copy; f32 accumulation)
    wqkv_t = jnp.concatenate(
        [params["wq"].T, params["wk"].T, params["wv"].T], axis=1
    ).astype(jnp.bfloat16)                                         # (C, 3C)
    bqkv = jnp.concatenate(
        [params["bq"], params["bk"], params["bv"]]
    ).reshape(1, 3 * C).astype(jnp.float32)                        # (1, 3C)
    wc_t = params["wc"].T.astype(jnp.bfloat16)                     # (C, O)
    bc = params["bc"].reshape(1, O).astype(jnp.float32)            # (1, O)
    if O_pad != O:
        wc_t = jnp.concatenate(
            [wc_t, jnp.zeros((C, O_pad - O), jnp.bfloat16)], axis=1)
        bc = jnp.concatenate(
            [bc, jnp.zeros((1, O_pad - O), jnp.float32)], axis=1)

    # per-head block-diagonal masks, built once (exact 0/1 in bf16)
    head_of = jnp.arange(C) // head_dim
    mask_ch = (head_of[:, None] == jnp.arange(num_heads)[None, :]).astype(jnp.bfloat16)
    mask_hc = jnp.transpose(mask_ch)                               # (Hh, C)

    # ---- VMEM budgeting (generation-aware) ----------------------------------
    x_itemsize = jnp.dtype(x_cs.dtype).itemsize
    try:
        hw_vmem = int(pltpu.get_tpu_info().vmem_capacity_bytes)
    except Exception:
        hw_vmem = 64 * 2 ** 20                                     # v7x per-TC floor

    single_buffer_consts = _supports_single_buffered_consts()
    const_mult = 1 if single_buffer_consts else 2                  # fallback doubles residents
    const_bytes = const_mult * (
        (wqkv_t.size + wc_t.size + mask_ch.size + mask_hc.size) * 2
        + (bqkv.size + bc.size + pos0.size + posr.size) * 4)

    def vmem_need(bt):
        stream = 2 * bt * C * S * x_itemsize + 2 * bt * O_pad * 4  # double-buffered x / out
        work = 12 * bt * S_pad * C * 4                             # in-kernel intermediates
        return const_bytes + stream + work

    if batch_tile is None:
        # M = Bt*S_pad ~ 512 for the 256-wide MXUs; keep >=2 blocks for v7x's 2 TCs;
        # shrink until the estimate fits ~80% of this generation's VMEM.
        bt = max(1, 512 // S_pad)
        if N >= 2:
            bt = min(bt, -(-N // 2))
        bt = min(bt, N)
        while bt > 1 and vmem_need(bt) > 0.8 * hw_vmem:
            bt -= 1
    else:
        bt = max(1, min(int(batch_tile), N))
    Bt = bt

    n_blocks = -(-N // Bt)
    N_pad = n_blocks * Bt
    if N_pad != N:
        x_cs = jnp.concatenate(
            [x_cs, jnp.zeros((N_pad - N, C, S), x_cs.dtype)], axis=0)

    vmem_limit = int(min(0.9 * hw_vmem, max(1.25 * vmem_need(Bt), 32 * 2 ** 20)))

    # ---- pallas_call ---------------------------------------------------------
    def const_spec(shape):
        idx = lambda b: (0,) * len(shape)
        if single_buffer_consts:
            return pl.BlockSpec(shape, idx, pipeline_mode=pl.Buffered(1))
        # TODO(synk): if pl.Buffered is ever unavailable, full-size CLIP weights on
        # v7x (64 MiB/TC) should instead stay in HBM (pl.ANY) and be DMA'd once.
        return pl.BlockSpec(shape, idx)

    kernel = functools.partial(_attn_pool_kernel, scale)
    out = pl.pallas_call(
        kernel,
        out_shape=jax.ShapeDtypeStruct((n_blocks, Bt, O_pad), jnp.float32),
        grid_spec=pltpu.PrefetchScalarGridSpec(
            num_scalar_prefetch=0,
            grid=(n_blocks,),
            in_specs=[
                pl.BlockSpec((Bt, C, S), lambda b: (b, 0, 0)),  # x, native dtype, streamed
                const_spec((1, C)),                             # pos[0]
                const_spec((S_pad, C)),                         # pos[1:], sublane-padded
                const_spec((C, 3 * C)),                         # fused Wqkv^T (bf16)
                const_spec((1, 3 * C)),                         # fused qkv bias (f32)
                const_spec((C, O_pad)),                         # Wc^T (bf16, lane-padded)
                const_spec((1, O_pad)),                         # bc (f32)
                const_spec((C, num_heads)),                     # head mask, feature->head
                const_spec((num_heads, C)),                     # head mask, head->feature
            ],
            out_specs=pl.BlockSpec((1, Bt, O_pad), lambda b: (b, 0, 0)),
        ),
        compiler_params=pltpu.CompilerParams(
            dimension_semantics=("parallel",),
            vmem_limit_bytes=vmem_limit,
        ),
    )(x_cs, pos0, posr, wqkv_t, bqkv, wc_t, bc, mask_ch, mask_hc)

    return out.reshape(N_pad, O_pad)[:N, :O]                       # (N, O)


def attention_pool_2d_reference(x_nchw, params, num_heads, matmul_dtype=jnp.float32):
    """Pure-JAX replica of the PyTorch forward.

    With matmul_dtype=jnp.bfloat16 the projection weights and pre-matmul
    activations are quantized like the kernel's bf16 MXU path (f32 accumulation),
    giving an apples-to-apples correctness reference."""
    N, C, H, W = x_nchw.shape
    S = H * W
    L = S + 1
    D = C // num_heads
    scale = float(D) ** -0.5

    def qz(a):  # emulate bf16 storage, f32 compute
        return a.astype(matmul_dtype).astype(jnp.float32)

    x = jnp.transpose(x_nchw.reshape(N, C, S), (2, 0, 1))            # (S, N, C)
    x = jnp.concatenate([x.mean(axis=0, keepdims=True), x], axis=0)  # (L, N, C)
    x = x + params["pos"][:, None, :]
    xq = qz(x)
    q = xq[:1] @ qz(params["wq"].T) + params["bq"]
    k = xq @ qz(params["wk"].T) + params["bk"]
    v = xq @ qz(params["wv"].T) + params["bv"]
    qh = q.reshape(1, N, num_heads, D) * scale
    kh = k.reshape(L, N, num_heads, D)
    vh = v.reshape(L, N, num_heads, D)
    scores = jnp.einsum("qnhd,knhd->nhqk", qh, kh)
    p = jax.nn.softmax(scores, axis=-1)
    o = jnp.einsum("nhqk,knhd->qnhd", p, vh).reshape(1, N, C)
    out = qz(o) @ qz(params["wc"].T) + params["bc"]
    return out[0]                                                    # (N, O)


def init_params(key, spacial_dim, embed_dim, output_dim):
    S = spacial_dim * spacial_dim
    ks = jax.random.split(key, 9)
    std = 1.0 / (embed_dim ** 0.5)
    return {
        "pos": jax.random.normal(ks[0], (S + 1, embed_dim), jnp.float32) * std,
        "wq": jax.random.normal(ks[1], (embed_dim, embed_dim), jnp.float32) * std,
        "bq": jax.random.normal(ks[2], (embed_dim,), jnp.float32) * 0.02,
        "wk": jax.random.normal(ks[3], (embed_dim, embed_dim), jnp.float32) * std,
        "bk": jax.random.normal(ks[4], (embed_dim,), jnp.float32) * 0.02,
        "wv": jax.random.normal(ks[5], (embed_dim, embed_dim), jnp.float32) * std,
        "bv": jax.random.normal(ks[6], (embed_dim,), jnp.float32) * 0.02,
        "wc": jax.random.normal(ks[7], (output_dim, embed_dim), jnp.float32) * std,
        "bc": jax.random.normal(ks[8], (output_dim,), jnp.float32) * 0.02,
    }


if __name__ == "__main__":
    # Small, module-consistent shapes: batch=2, embed_dim=32, spacial_dim=4,
    # num_heads=4 (head_dim=8), output_dim=64.
    batch, embed_dim, spacial_dim, num_heads, output_dim = 2, 32, 4, 4, 64

    key = jax.random.PRNGKey(0)
    k_params, k_x = jax.random.split(key)
    params = init_params(k_params, spacial_dim, embed_dim, output_dim)
    x = jax.random.normal(k_x, (batch, embed_dim, spacial_dim, spacial_dim),
                          jnp.float32)

    out = attention_pool_2d(x, params, num_heads)
    out = jax.block_until_ready(out)

    # Compare against a reference using the same bf16 weight/activation
    # quantization (tolerance reflects the bf16 MXU path + approx EUP reciprocal).
    ref = attention_pool_2d_reference(x, params, num_heads,
                                      matmul_dtype=jnp.bfloat16)
    assert out.shape == (batch, output_dim), out.shape
    assert jnp.allclose(out, ref, atol=4e-2, rtol=4e-2), (
        float(jnp.max(jnp.abs(out - ref))))

    print("KERNEL_OK")
</pallas_src>

<mosaic_0001>
module attributes {stable_mosaic.version = 11 : i64} {
  func.func @_attn_pool_kernel(%arg0: i32, %arg1: memref<1x32x16xf32, #tpu.memory_space<vmem>>, %arg2: memref<1x32xf32, #tpu.memory_space<vmem>>, %arg3: memref<16x32xf32, #tpu.memory_space<vmem>>, %arg4: memref<32x96xbf16, #tpu.memory_space<vmem>>, %arg5: memref<1x96xf32, #tpu.memory_space<vmem>>, %arg6: memref<32x128xbf16, #tpu.memory_space<vmem>>, %arg7: memref<1x128xf32, #tpu.memory_space<vmem>>, %arg8: memref<32x4xbf16, #tpu.memory_space<vmem>>, %arg9: memref<4x32xbf16, #tpu.memory_space<vmem>>, %arg10: memref<1x1x128xf32, #tpu.memory_space<vmem>>) attributes {dimension_semantics = [#tpu.dimension_semantics<parallel>], iteration_bounds = array<i64: 2>, scalar_prefetch = 0 : i64, scratch_operands = 0 : i64, tpu.core_type = #tpu.core_type<tc>, window_params = [{transform_indices = @transform_0, window_bounds = array<i64: 1, 32, 16>}, {pipeline_mode = #tpu.pipeline_mode<synchronous>, transform_indices = @transform_1, window_bounds = array<i64: 1, 32>}, {pipeline_mode = #tpu.pipeline_mode<synchronous>, transform_indices = @transform_2, window_bounds = array<i64: 16, 32>}, {pipeline_mode = #tpu.pipeline_mode<synchronous>, transform_indices = @transform_3, window_bounds = array<i64: 32, 96>}, {pipeline_mode = #tpu.pipeline_mode<synchronous>, transform_indices = @transform_4, window_bounds = array<i64: 1, 96>}, {pipeline_mode = #tpu.pipeline_mode<synchronous>, transform_indices = @transform_5, window_bounds = array<i64: 32, 128>}, {pipeline_mode = #tpu.pipeline_mode<synchronous>, transform_indices = @transform_6, window_bounds = array<i64: 1, 128>}, {pipeline_mode = #tpu.pipeline_mode<synchronous>, transform_indices = @transform_7, window_bounds = array<i64: 32, 4>}, {pipeline_mode = #tpu.pipeline_mode<synchronous>, transform_indices = @transform_8, window_bounds = array<i64: 4, 32>}, {transform_indices = @transform_9, window_bounds = array<i64: 1, 1, 128>}]} {
    %c0 = arith.constant 0 : index
    %c0_0 = arith.constant 0 : index
    %c0_1 = arith.constant 0 : index
    %0 = vector.load %arg1[%c0, %c0_0, %c0_1] : memref<1x32x16xf32, #tpu.memory_space<vmem>>, vector<1x32x16xf32>
    %1 = tpu.transpose %0, [0, 2, 1] : vector<1x32x16xf32> -> vector<1x16x32xf32>
    %cst = arith.constant dense<0.000000e+00> : vector<1x32xf32>
    %2 = vector.multi_reduction <add>, %1, %cst [1] : vector<1x16x32xf32> to vector<1x32xf32>
    %cst_2 = arith.constant 6.250000e-02 : f32
    %3 = vector.broadcast %cst_2 : f32 to vector<1x32xf32>
    %4 = arith.mulf %2, %3 : vector<1x32xf32>
    %c0_3 = arith.constant 0 : index
    %c0_4 = arith.constant 0 : index
    %5 = vector.load %arg2[%c0_3, %c0_4] : memref<1x32xf32, #tpu.memory_space<vmem>>, vector<1x32xf32>
    %6 = arith.addf %4, %5 : vector<1x32xf32>
    %c0_5 = arith.constant 0 : index
    %c0_6 = arith.constant 0 : index
    %7 = vector.load %arg3[%c0_5, %c0_6] : memref<16x32xf32, #tpu.memory_space<vmem>>, vector<16x32xf32>
    %8 = vector.shape_cast %7 : vector<16x32xf32> to vector<1x16x32xf32>
    %9 = arith.addf %1, %8 : vector<1x16x32xf32>
    %10 = vector.shape_cast %9 : vector<1x16x32xf32> to vector<16x32xf32>
    %c0_7 = arith.constant 0 : index
    %c0_8 = arith.constant 0 : index
    %11 = vector.load %arg4[%c0_7, %c0_8] : memref<32x96xbf16, #tpu.memory_space<vmem>>, vector<32x96xbf16>
    %c0_9 = arith.constant 0 : index
    %c0_10 = arith.constant 0 : index
    %12 = vector.load %arg5[%c0_9, %c0_10] : memref<1x96xf32, #tpu.memory_space<vmem>>, vector<1x96xf32>
    %13 = arith.truncf %6 : vector<1x32xf32> to vector<1x32xbf16>
    %cst_11 = arith.constant dense<0.000000e+00> : vector<1x96xf32>
    %14 = tpu.matmul %13, %11, %cst_11 {dimension_numbers = #tpu.dot_dimension_numbers<[1], [0], [0], [1], [0, 0, 1, 1], [], []>} : vector<1x32xbf16>, vector<32x96xbf16>, vector<1x96xf32> -> vector<1x96xf32>
    %15 = arith.addf %14, %12 : vector<1x96xf32>
    %16 = vector.extract_strided_slice %15 {offsets = [0, 0], sizes = [1, 32], strides = [1, 1]} : vector<1x96xf32> to vector<1x32xf32>
    %cst_12 = arith.constant 0.353553385 : f32
    %17 = vector.broadcast %cst_12 : f32 to vector<1x32xf32>
    %18 = arith.mulf %16, %17 : vector<1x32xf32>
    %19 = vector.extract_strided_slice %15 {offsets = [0, 32], sizes = [1, 32], strides = [1, 1]} : vector<1x96xf32> to vector<1x32xf32>
    %20 = vector.extract_strided_slice %15 {offsets = [0, 64], sizes = [1, 32], strides = [1, 1]} : vector<1x96xf32> to vector<1x32xf32>
    %21 = arith.truncf %10 : vector<16x32xf32> to vector<16x32xbf16>
    %22 = vector.extract_strided_slice %11 {offsets = [0, 32], sizes = [32, 64], strides = [1, 1]} : vector<32x96xbf16> to vector<32x64xbf16>
    %cst_13 = arith.constant dense<0.000000e+00> : vector<16x64xf32>
    %23 = tpu.matmul %21, %22, %cst_13 {dimension_numbers = #tpu.dot_dimension_numbers<[1], [0], [0], [1], [0, 0, 1, 1], [], []>} : vector<16x32xbf16>, vector<32x64xbf16>, vector<16x64xf32> -> vector<16x64xf32>
    %24 = vector.extract_strided_slice %12 {offsets = [0, 32], sizes = [1, 64], strides = [1, 1]} : vector<1x96xf32> to vector<1x64xf32>
    %25 = vector.broadcast %24 : vector<1x64xf32> to vector<16x64xf32>
    %26 = arith.addf %23, %25 : vector<16x64xf32>
    %27 = vector.extract_strided_slice %26 {offsets = [0, 0], sizes = [16, 32], strides = [1, 1]} : vector<16x64xf32> to vector<16x32xf32>
    %28 = vector.shape_cast %27 : vector<16x32xf32> to vector<1x16x32xf32>
    %29 = vector.extract_strided_slice %26 {offsets = [0, 32], sizes = [16, 32], strides = [1, 1]} : vector<16x64xf32> to vector<16x32xf32>
    %30 = vector.shape_cast %29 : vector<16x32xf32> to vector<1x16x32xf32>
    %c0_14 = arith.constant 0 : index
    %c0_15 = arith.constant 0 : index
    %31 = vector.load %arg8[%c0_14, %c0_15] : memref<32x4xbf16, #tpu.memory_space<vmem>>, vector<32x4xbf16>
    %c0_16 = arith.constant 0 : index
    %c0_17 = arith.constant 0 : index
    %32 = vector.load %arg9[%c0_16, %c0_17] : memref<4x32xbf16, #tpu.memory_space<vmem>>, vector<4x32xbf16>
    %33 = arith.mulf %18, %19 : vector<1x32xf32>
    %34 = arith.truncf %33 : vector<1x32xf32> to vector<1x32xbf16>
    %cst_18 = arith.constant dense<0.000000e+00> : vector<1x4xf32>
    %35 = tpu.matmul %34, %31, %cst_18 {dimension_numbers = #tpu.dot_dimension_numbers<[1], [0], [0], [1], [0, 0, 1, 1], [], []>} : vector<1x32xbf16>, vector<32x4xbf16>, vector<1x4xf32> -> vector<1x4xf32>
    %36 = vector.shape_cast %18 : vector<1x32xf32> to vector<1x1x32xf32>
    %37 = vector.broadcast %36 : vector<1x1x32xf32> to vector<1x16x32xf32>
    %38 = arith.mulf %37, %28 : vector<1x16x32xf32>
    %39 = vector.shape_cast %38 : vector<1x16x32xf32> to vector<16x32xf32>
    %40 = arith.truncf %39 : vector<16x32xf32> to vector<16x32xbf16>
    %cst_19 = arith.constant dense<0.000000e+00> : vector<16x4xf32>
    %41 = tpu.matmul %40, %31, %cst_19 {dimension_numbers = #tpu.dot_dimension_numbers<[1], [0], [0], [1], [0, 0, 1, 1], [], []>} : vector<16x32xbf16>, vector<32x4xbf16>, vector<16x4xf32> -> vector<16x4xf32>
    %42 = vector.shape_cast %41 : vector<16x4xf32> to vector<1x16x4xf32>
    %cst_20 = arith.constant dense<0xFF800000> : vector<1x4xf32>
    %43 = vector.multi_reduction <maximumf>, %42, %cst_20 [1] : vector<1x16x4xf32> to vector<1x4xf32>
    %44 = arith.maximumf %43, %35 : vector<1x4xf32>
    %45 = arith.subf %35, %44 : vector<1x4xf32>
    %46 = math.exp %45 : vector<1x4xf32>
    %47 = vector.shape_cast %44 : vector<1x4xf32> to vector<1x1x4xf32>
    %48 = vector.broadcast %47 : vector<1x1x4xf32> to vector<1x16x4xf32>
    %49 = arith.subf %42, %48 : vector<1x16x4xf32>
    %50 = math.exp %49 : vector<1x16x4xf32>
    %cst_21 = arith.constant dense<0.000000e+00> : vector<1x4xf32>
    %51 = vector.multi_reduction <add>, %50, %cst_21 [1] : vector<1x16x4xf32> to vector<1x4xf32>
    %52 = arith.addf %46, %51 : vector<1x4xf32>
    %53 = tpu.reciprocal %52 {approx = true} : vector<1x4xf32> -> vector<1x4xf32>
    %54 = arith.mulf %46, %53 : vector<1x4xf32>
    %55 = vector.shape_cast %53 : vector<1x4xf32> to vector<1x1x4xf32>
    %56 = vector.broadcast %55 : vector<1x1x4xf32> to vector<1x16x4xf32>
    %57 = arith.mulf %50, %56 : vector<1x16x4xf32>
    %58 = arith.truncf %54 : vector<1x4xf32> to vector<1x4xbf16>
    %cst_22 = arith.constant dense<0.000000e+00> : vector<1x32xf32>
    %59 = tpu.matmul %58, %32, %cst_22 {dimension_numbers = #tpu.dot_dimension_numbers<[1], [0], [0], [1], [0, 0, 1, 1], [], []>} : vector<1x4xbf16>, vector<4x32xbf16>, vector<1x32xf32> -> vector<1x32xf32>
    %60 = vector.shape_cast %57 : vector<1x16x4xf32> to vector<16x4xf32>
    %61 = arith.truncf %60 : vector<16x4xf32> to vector<16x4xbf16>
    %cst_23 = arith.constant dense<0.000000e+00> : vector<16x32xf32>
    %62 = tpu.matmul %61, %32, %cst_23 {dimension_numbers = #tpu.dot_dimension_numbers<[1], [0], [0], [1], [0, 0, 1, 1], [], []>} : vector<16x4xbf16>, vector<4x32xbf16>, vector<16x32xf32> -> vector<16x32xf32>
    %63 = vector.shape_cast %62 : vector<16x32xf32> to vector<1x16x32xf32>
    %64 = arith.mulf %59, %20 : vector<1x32xf32>
    %65 = arith.mulf %63, %30 : vector<1x16x32xf32>
    %cst_24 = arith.constant dense<0.000000e+00> : vector<1x32xf32>
    %66 = vector.multi_reduction <add>, %65, %cst_24 [1] : vector<1x16x32xf32> to vector<1x32xf32>
    %67 = arith.addf %64, %66 : vector<1x32xf32>
    %68 = arith.truncf %67 : vector<1x32xf32> to vector<1x32xbf16>
    %c0_25 = arith.constant 0 : index
    %c0_26 = arith.constant 0 : index
    %69 = vector.load %arg6[%c0_25, %c0_26] : memref<32x128xbf16, #tpu.memory_space<vmem>>, vector<32x128xbf16>
    %cst_27 = arith.constant dense<0.000000e+00> : vector<1x128xf32>
    %70 = tpu.matmul %68, %69, %cst_27 {dimension_numbers = #tpu.dot_dimension_numbers<[1], [0], [0], [1], [0, 0, 1, 1], [], []>} : vector<1x32xbf16>, vector<32x128xbf16>, vector<1x128xf32> -> vector<1x128xf32>
    %c0_28 = arith.constant 0 : index
    %c0_29 = arith.constant 0 : index
    %71 = vector.load %arg7[%c0_28, %c0_29] : memref<1x128xf32, #tpu.memory_space<vmem>>, vector<1x128xf32>
    %72 = arith.addf %70, %71 : vector<1x128xf32>
    %c0_30 = arith.constant 0 : index
    %c0_31 = arith.constant 0 : index
    %c0_32 = arith.constant 0 : index
    %73 = vector.load %arg10[%c0_30, %c0_31, %c0_32] : memref<1x1x128xf32, #tpu.memory_space<vmem>>, vector<1x1x128xf32>
    %74 = vector.shape_cast %73 : vector<1x1x128xf32> to vector<1x128xf32>
    %75 = vector.shape_cast %72 : vector<1x128xf32> to vector<1x1x128xf32>
    tpu.vector_store %arg10[%c0_30, %c0_31, %c0_32], %75 {strides = array<i32>} : memref<1x1x128xf32, #tpu.memory_space<vmem>>, vector<1x1x128xf32>,
    return
  }
  func.func @transform_0(%arg0: i32) -> (i32, i32, i32) {
    %c0_i32 = arith.constant 0 : i32
    %c0_i32_0 = arith.constant 0 : i32
    %c0_i32_1 = arith.constant 0 : i32
    return %arg0, %c0_i32, %c0_i32_0 : i32, i32, i32
  }
  func.func @transform_1(%arg0: i32) -> (i32, i32) {
    %c0_i32 = arith.constant 0 : i32
    %c0_i32_0 = arith.constant 0 : i32
    %c0_i32_1 = arith.constant 0 : i32
    return %c0_i32, %c0_i32_0 : i32, i32
  }
  func.func @transform_2(%arg0: i32) -> (i32, i32) {
    %c0_i32 = arith.constant 0 : i32
    %c0_i32_0 = arith.constant 0 : i32
    %c0_i32_1 = arith.constant 0 : i32
    return %c0_i32, %c0_i32_0 : i32, i32
  }
  func.func @transform_3(%arg0: i32) -> (i32, i32) {
    %c0_i32 = arith.constant 0 : i32
    %c0_i32_0 = arith.constant 0 : i32
    %c0_i32_1 = arith.constant 0 : i32
    return %c0_i32, %c0_i32_0 : i32, i32
  }
  func.func @transform_4(%arg0: i32) -> (i32, i32) {
    %c0_i32 = arith.constant 0 : i32
    %c0_i32_0 = arith.constant 0 : i32
    %c0_i32_1 = arith.constant 0 : i32
    return %c0_i32, %c0_i32_0 : i32, i32
  }
  func.func @transform_5(%arg0: i32) -> (i32, i32) {
    %c0_i32 = arith.constant 0 : i32
    %c0_i32_0 = arith.constant 0 : i32
    %c0_i32_1 = arith.constant 0 : i32
    return %c0_i32, %c0_i32_0 : i32, i32
  }
  func.func @transform_6(%arg0: i32) -> (i32, i32) {
    %c0_i32 = arith.constant 0 : i32
    %c0_i32_0 = arith.constant 0 : i32
    %c0_i32_1 = arith.constant 0 : i32
    return %c0_i32, %c0_i32_0 : i32, i32
  }
  func.func @transform_7(%arg0: i32) -> (i32, i32) {
    %c0_i32 = arith.constant 0 : i32
    %c0_i32_0 = arith.constant 0 : i32
    %c0_i32_1 = arith.constant 0 : i32
    return %c0_i32, %c0_i32_0 : i32, i32
  }
  func.func @transform_8(%arg0: i32) -> (i32, i32) {
    %c0_i32 = arith.constant 0 : i32
    %c0_i32_0 = arith.constant 0 : i32
    %c0_i32_1 = arith.constant 0 : i32
    return %c0_i32, %c0_i32_0 : i32, i32
  }
  func.func @transform_9(%arg0: i32) -> (i32, i32, i32) {
    %c0_i32 = arith.constant 0 : i32
    %c0_i32_0 = arith.constant 0 : i32
    %c0_i32_1 = arith.constant 0 : i32
    return %arg0, %c0_i32, %c0_i32_0 : i32, i32, i32
  }
}

</mosaic_0001>

<llo_original>
// kernel: tpu_custom_call.1
$region0: #{tpu_custom_call.1}
  #allocation0 [shape = 'u32[]', space=smem, size = 0x4, offset = 0x4, fixed_abs, tag = 'smem constant byte address 0x4 - core index']
  #allocation1 [shape = 'u32[144,128]{1,0:T(1,128)}', space=vmem, size = 0x12000, scoped, tag = 'internal scratch']
  %s0 = inlined_call_operand.vmem [shape: f32[2,32,16], index: 0, kind: input, shape index: {}]
  %s1 = inlined_call_operand.vmem [shape: f32[1,32], index: 1, kind: input, shape index: {}]
  %s2 = inlined_call_operand.vmem [shape: f32[16,32], index: 2, kind: input, shape index: {}]
  %s3 = inlined_call_operand.vmem [shape: bf16[32,96], index: 3, kind: input, shape index: {}]
  %s4 = inlined_call_operand.vmem [shape: f32[1,96], index: 4, kind: input, shape index: {}]
  %s5 = inlined_call_operand.vmem [shape: bf16[32,128], index: 5, kind: input, shape index: {}]
  %s6 = inlined_call_operand.vmem [shape: f32[1,128], index: 6, kind: input, shape index: {}]
  %s7 = inlined_call_operand.vmem [shape: bf16[32,4], index: 7, kind: input, shape index: {}]
  %s8 = inlined_call_operand.vmem [shape: bf16[4,32], index: 8, kind: input, shape index: {}]
  %s9 = inlined_call_operand.hbm [shape: f32[2,1,128], index: 9, kind: output, shape index: {}]
  %s10 = sld [smem:[#allocation0]]
  $region69: #{tpu_custom_call.1} parent=0
    _
  %s12 = ssub.s32 1, %s10
  %s13 = scalar_select 0, %s12, %s10
  $region1: #{tpu_custom_call.1} parent=0
    #allocation2 [shape = 'u8[1024]{0}', space=vmem, size = 0x400, scoped, tag = 'output window, operand 0']
    #allocation3 [shape = 's32[2]{0}', space=sflag, size = 0x8, scoped, tag = 'scoped memory for tpu_custom_call.1']
    %14 = vsyncpa [#allocation3], 0
    %s15 = scalar_lea.sflag [#allocation3], 1
    %16 = vsyncpa %s15, 0
    loop: start=0, step=1, limit=4
    $region2: #{tpu_custom_call.1} parent=1 // loop_pre_header
      _
    $region3: #{tpu_custom_call.1} parent=1 // loop_header
      %s18 = sphi 0, %s22
      %p19 = scmp.ge.s32.totalorder %s18, 4
      %s28 = sphi 0, %s30
      %s31 = sphi 0, %s28
      %s32 = sphi 0, %s31
      %s48 = sphi 0, %s32
      %s52 = sphi 0, %s52
      %s54 = sphi 0, %s52
      %s55 = sphi 0, %s54
      %s69 = sphi 0, %s55
      %s73 = sphi 0, %s73
      %s75 = sphi 0, %s73
      %s76 = sphi 0, %s75
      %s90 = sphi 0, %s76
      %s94 = sphi 0, %s94
      %s96 = sphi 0, %s94
      %s97 = sphi 0, %s96
      %s111 = sphi 0, %s97
      %s115 = sphi 0, %s115
      %s117 = sphi 0, %s115
      %s118 = sphi 0, %s117
      %s132 = sphi 0, %s118
      %s136 = sphi 0, %s136
      %s138 = sphi 0, %s136
      %s139 = sphi 0, %s138
      %s153 = sphi 0, %s139
      %s157 = sphi 0, %s157
      %s159 = sphi 0, %s157
      %s160 = sphi 0, %s159
      %s174 = sphi 0, %s160
      %s178 = sphi 0, %s178
      %s180 = sphi 0, %s178
      %s181 = sphi 0, %s180
      %s195 = sphi 0, %s181
      %s199 = sphi 0, %s199
      %s201 = sphi 0, %s199
      %s202 = sphi 0, %s201
      %s216 = sphi 0, %s202
      %s222 = sphi 0, %s224
      %s225 = sphi 0, %s222
      %s226 = sphi 0, %s225
      %s242 = sphi 0, %s226
    $region4: #{tpu_custom_call.1} parent=1 // loop_header_branch
      %21 = sbr.rel (%p19) target = $region8
    $region5: #{tpu_custom_call.1} parent=1 // loop_body
      %s23 = ssub.s32 %s18, 1
      %s24 = ssub.s32 %s18, 2
      %s25 = sadd.s32 %s18, 1
      %s26 = ssub.s32 %s18, %s25
      %p27 = scmp.eq.s32.totalorder %s26, 0
      %s29 = sadd.s32 %s28, 1
      %s30 = scalar_select %p27, %s28, %s29
      %p33 = pneg %p27
      %p34 = scmp.eq.s32.totalorder %s18, 1
      %p35 = por %p33, %p34
      %p36 = scmp.ne.s32.totalorder %s28, %s31
      %p37 = scmp.eq.s32.totalorder %s18, 0
      %p38 = por %p36, %p37
      %p39 = scmp.ne.s32.totalorder %s28, %s31
      %p40 = scmp.eq.s32.totalorder %s23, 1
      %p41 = por %p39, %p40
      %p42 = scmp.ne.s32.totalorder %s31, %s32
      %p43 = scmp.eq.s32.totalorder %s23, 0
      %p44 = por %p42, %p43
      %p45 = scmp.ne.s32.totalorder %s31, %s32
      %p46 = scmp.eq.s32.totalorder %s24, 1
      %p47 = por %p45, %p46
      %p49 = scmp.ne.s32.totalorder %s32, %s48
      %p50 = scmp.eq.s32.totalorder %s24, 0
      %p51 = por %p49, %p50
      %s53 = sadd.s32 %s52, 1
      %p56 = scmp.eq.s32.totalorder %s18, 1
      %p57 = scmp.ne.s32.totalorder %s52, %s54
      %p58 = scmp.eq.s32.totalorder %s18, 0
      %p59 = por %p57, %p58
      %p60 = scmp.ne.s32.totalorder %s52, %s54
      %p61 = scmp.eq.s32.totalorder %s23, 1
      %p62 = por %p60, %p61
      %p63 = scmp.ne.s32.totalorder %s54, %s55
      %p64 = scmp.eq.s32.totalorder %s23, 0
      %p65 = por %p63, %p64
      %p66 = scmp.ne.s32.totalorder %s54, %s55
      %p67 = scmp.eq.s32.totalorder %s24, 1
      %p68 = por %p66, %p67
      %p70 = scmp.ne.s32.totalorder %s55, %s69
      %p71 = scmp.eq.s32.totalorder %s24, 0
      %p72 = por %p70, %p71
      %s74 = sadd.s32 %s73, 1
      %p77 = scmp.eq.s32.totalorder %s18, 1
      %p78 = scmp.ne.s32.totalorder %s73, %s75
      %p79 = scmp.eq.s32.totalorder %s18, 0
      %p80 = por %p78, %p79
      %p81 = scmp.ne.s32.totalorder %s73, %s75
      %p82 = scmp.eq.s32.totalorder %s23, 1
      %p83 = por %p81, %p82
      %p84 = scmp.ne.s32.totalorder %s75, %s76
      %p85 = scmp.eq.s32.totalorder %s23, 0
      %p86 = por %p84, %p85
      %p87 = scmp.ne.s32.totalorder %s75, %s76
      %p88 = scmp.eq.s32.totalorder %s24, 1
      %p89 = por %p87, %p88
      %p91 = scmp.ne.s32.totalorder %s76, %s90
      %p92 = scmp.eq.s32.totalorder %s24, 0
      %p93 = por %p91, %p92
      %s95 = sadd.s32 %s94, 1
      %p98 = scmp.eq.s32.totalorder %s18, 1
      %p99 = scmp.ne.s32.totalorder %s94, %s96
      %p100 = scmp.eq.s32.totalorder %s18, 0
      %p101 = por %p99, %p100
      %p102 = scmp.ne.s32.totalorder %s94, %s96
      %p103 = scmp.eq.s32.totalorder %s23, 1
      %p104 = por %p102, %p103
      %p105 = scmp.ne.s32.totalorder %s96, %s97
      %p106 = scmp.eq.s32.totalorder %s23, 0
      %p107 = por %p105, %p106
      %p108 = scmp.ne.s32.totalorder %s96, %s97
      %p109 = scmp.eq.s32.totalorder %s24, 1
      %p110 = por %p108, %p109
      %p112 = scmp.ne.s32.totalorder %s97, %s111
      %p113 = scmp.eq.s32.totalorder %s24, 0
      %p114 = por %p112, %p113
      %s116 = sadd.s32 %s115, 1
      %p119 = scmp.eq.s32.totalorder %s18, 1
      %p120 = scmp.ne.s32.totalorder %s115, %s117
      %p121 = scmp.eq.s32.totalorder %s18, 0
      %p122 = por %p120, %p121
      %p123 = scmp.ne.s32.totalorder %s115, %s117
      %p124 = scmp.eq.s32.totalorder %s23, 1
      %p125 = por %p123, %p124
      %p126 = scmp.ne.s32.totalorder %s117, %s118
      %p127 = scmp.eq.s32.totalorder %s23, 0
      %p128 = por %p126, %p127
      %p129 = scmp.ne.s32.totalorder %s117, %s118
      %p130 = scmp.eq.s32.totalorder %s24, 1
      %p131 = por %p129, %p130
      %p133 = scmp.ne.s32.totalorder %s118, %s132
      %p134 = scmp.eq.s32.totalorder %s24, 0
      %p135 = por %p133, %p134
      %s137 = sadd.s32 %s136, 1
      %p140 = scmp.eq.s32.totalorder %s18, 1
      %p141 = scmp.ne.s32.totalorder %s136, %s138
      %p142 = scmp.eq.s32.totalorder %s18, 0
      %p143 = por %p141, %p142
      %p144 = scmp.ne.s32.totalorder %s136, %s138
      %p145 = scmp.eq.s32.totalorder %s23, 1
      %p146 = por %p144, %p145
      %p147 = scmp.ne.s32.totalorder %s138, %s139
      %p148 = scmp.eq.s32.totalorder %s23, 0
      %p149 = por %p147, %p148
      %p150 = scmp.ne.s32.totalorder %s138, %s139
      %p151 = scmp.eq.s32.totalorder %s24, 1
      %p152 = por %p150, %p151
      %p154 = scmp.ne.s32.totalorder %s139, %s153
      %p155 = scmp.eq.s32.totalorder %s24, 0
      %p156 = por %p154, %p155
      %s158 = sadd.s32 %s157, 1
      %p161 = scmp.eq.s32.totalorder %s18, 1
      %p162 = scmp.ne.s32.totalorder %s157, %s159
      %p163 = scmp.eq.s32.totalorder %s18, 0
      %p164 = por %p162, %p163
      %p165 = scmp.ne.s32.totalorder %s157, %s159
      %p166 = scmp.eq.s32.totalorder %s23, 1
      %p167 = por %p165, %p166
      %p168 = scmp.ne.s32.totalorder %s159, %s160
      %p169 = scmp.eq.s32.totalorder %s23, 0
      %p170 = por %p168, %p169
      %p171 = scmp.ne.s32.totalorder %s159, %s160
      %p172 = scmp.eq.s32.totalorder %s24, 1
      %p173 = por %p171, %p172
      %p175 = scmp.ne.s32.totalorder %s160, %s174
      %p176 = scmp.eq.s32.totalorder %s24, 0
      %p177 = por %p175, %p176
      %s179 = sadd.s32 %s178, 1
      %p182 = scmp.eq.s32.totalorder %s18, 1
      %p183 = scmp.ne.s32.totalorder %s178, %s180
      %p184 = scmp.eq.s32.totalorder %s18, 0
      %p185 = por %p183, %p184
      %p186 = scmp.ne.s32.totalorder %s178, %s180
      %p187 = scmp.eq.s32.totalorder %s23, 1
      %p188 = por %p186, %p187
      %p189 = scmp.ne.s32.totalorder %s180, %s181
      %p190 = scmp.eq.s32.totalorder %s23, 0
      %p191 = por %p189, %p190
      %p192 = scmp.ne.s32.totalorder %s180, %s181
      %p193 = scmp.eq.s32.totalorder %s24, 1
      %p194 = por %p192, %p193
      %p196 = scmp.ne.s32.totalorder %s181, %s195
      %p197 = scmp.eq.s32.totalorder %s24, 0
      %p198 = por %p196, %p197
      %s200 = sadd.s32 %s199, 1
      %p203 = scmp.eq.s32.totalorder %s18, 1
      %p204 = scmp.ne.s32.totalorder %s199, %s201
      %p205 = scmp.eq.s32.totalorder %s18, 0
      %p206 = por %p204, %p205
      %p207 = scmp.ne.s32.totalorder %s199, %s201
      %p208 = scmp.eq.s32.totalorder %s23, 1
      %p209 = por %p207, %p208
      %p210 = scmp.ne.s32.totalorder %s201, %s202
      %p211 = scmp.eq.s32.totalorder %s23, 0
      %p212 = por %p210, %p211
      %p213 = scmp.ne.s32.totalorder %s201, %s202
      %p214 = scmp.eq.s32.totalorder %s24, 1
      %p215 = por %p213, %p214
      %p217 = scmp.ne.s32.totalorder %s202, %s216
      %p218 = scmp.eq.s32.totalorder %s24, 0
      %p219 = por %p217, %p218
      %s220 = ssub.s32 %s18, %s25
      %p221 = scmp.eq.s32.totalorder %s220, 0
      %s223 = sadd.s32 %s222, 1
      %s224 = scalar_select %p221, %s222, %s223
      %p227 = pneg %p221
      %p228 = scmp.eq.s32.totalorder %s18, 1
      %p229 = por %p227, %p228
      %p230 = scmp.ne.s32.totalorder %s222, %s225
      %p231 = scmp.eq.s32.totalorder %s18, 0
      %p232 = por %p230, %p231
      %p233 = scmp.ne.s32.totalorder %s222, %s225
      %p234 = scmp.eq.s32.totalorder %s23, 1
      %p235 = por %p233, %p234
      %p236 = scmp.ne.s32.totalorder %s225, %s226
      %p237 = scmp.eq.s32.totalorder %s23, 0
      %p238 = por %p236, %p237
      %p239 = scmp.ne.s32.totalorder %s225, %s226
      %p240 = scmp.eq.s32.totalorder %s24, 1
      %p241 = por %p239, %p240
      %p243 = scmp.ne.s32.totalorder %s226, %s242
      %p244 = scmp.eq.s32.totalorder %s24, 0
      %p245 = por %p243, %p244
      %p246 = scmp.le.s32.totalorder 1, %s18
      %p247 = scmp.lt.s32.totalorder %s18, 3
      %p248 = pnand %p246, %p247
      %p249 = pneg %p248
      // Predicated region
      $region9: #{tpu_custom_call.1} parent=5 // pred_check
        _
      $region10: #{tpu_custom_call.1} parent=5 // pred_check_branch
        %251 = sbr.rel (%p248) target = $region12
      $region11: #{tpu_custom_call.1} parent=5 // pred_region
        %s252 = ssub.s32 %s18, 1
        // Predicated region
        $region13: #{tpu_custom_call.1} parent=11 // pred_check
          %p253 = pneg %p65
        $region14: #{tpu_custom_call.1} parent=11 // pred_check_branch
          %255 = sbr.rel (%p253) target = $region16
        $region15: #{tpu_custom_call.1} parent=11 // pred_region
          _
        $region16: #{tpu_custom_call.1} parent=11 // pred_fallthru
          _
        // Predicated region
        $region17: #{tpu_custom_call.1} parent=11 // pred_check
          %p256 = pneg %p86
        $region18: #{tpu_custom_call.1} parent=11 // pred_check_branch
          %258 = sbr.rel (%p256) target = $region20
        $region19: #{tpu_custom_call.1} parent=11 // pred_region
          _
        $region20: #{tpu_custom_call.1} parent=11 // pred_fallthru
          _
        // Predicated region
        $region21: #{tpu_custom_call.1} parent=11 // pred_check
          %p259 = pneg %p107
        $region22: #{tpu_custom_call.1} parent=11 // pred_check_branch
          %261 = sbr.rel (%p259) target = $region24
        $region23: #{tpu_custom_call.1} parent=11 // pred_region
          _
        $region24: #{tpu_custom_call.1} parent=11 // pred_fallthru
          _
        // Predicated region
        $region25: #{tpu_custom_call.1} parent=11 // pred_check
          %p262 = pneg %p128
        $region26: #{tpu_custom_call.1} parent=11 // pred_check_branch
          %264 = sbr.rel (%p262) target = $region28
        $region27: #{tpu_custom_call.1} parent=11 // pred_region
          _
        $region28: #{tpu_custom_call.1} parent=11 // pred_fallthru
          _
        // Predicated region
        $region29: #{tpu_custom_call.1} parent=11 // pred_check
          %p265 = pneg %p149
        $region30: #{tpu_custom_call.1} parent=11 // pred_check_branch
          %267 = sbr.rel (%p265) target = $region32
        $region31: #{tpu_custom_call.1} parent=11 // pred_region
          _
        $region32: #{tpu_custom_call.1} parent=11 // pred_fallthru
          _
        // Predicated region
        $region33: #{tpu_custom_call.1} parent=11 // pred_check
          %p268 = pneg %p170
        $region34: #{tpu_custom_call.1} parent=11 // pred_check_branch
          %270 = sbr.rel (%p268) target = $region36
        $region35: #{tpu_custom_call.1} parent=11 // pred_region
          _
        $region36: #{tpu_custom_call.1} parent=11 // pred_fallthru
          _
        // Predicated region
        $region37: #{tpu_custom_call.1} parent=11 // pred_check
          %p271 = pneg %p191
        $region38: #{tpu_custom_call.1} parent=11 // pred_check_branch
          %273 = sbr.rel (%p271) target = $region40
        $region39: #{tpu_custom_call.1} parent=11 // pred_region
          _
        $region40: #{tpu_custom_call.1} parent=11 // pred_fallthru
          _
        // Predicated region
        $region41: #{tpu_custom_call.1} parent=11 // pred_check
          %p274 = pneg %p212
        $region42: #{tpu_custom_call.1} parent=11 // pred_check_branch
          %276 = sbr.rel (%p274) target = $region44
        $region43: #{tpu_custom_call.1} parent=11 // pred_region
          _
        $region44: #{tpu_custom_call.1} parent=11 // pred_fallthru
          _
      $region12: #{tpu_custom_call.1} parent=5 // pred_fallthru
        _
      %p277 = scmp.lt.s32.totalorder %s18, 2
      // Predicated region
      $region45: #{tpu_custom_call.1} parent=5 // pred_check
        %p278 = pneg %p277
      $region46: #{tpu_custom_call.1} parent=5 // pred_check_branch
        %280 = sbr.rel (%p278) target = $region48
      $region47: #{tpu_custom_call.1} parent=5 // pred_region
        // Predicated region
        $region49: #{tpu_custom_call.1} parent=47 // pred_check
          %p281 = pneg %p38
        $region50: #{tpu_custom_call.1} parent=47 // pred_check_branch
          %283 = sbr.rel (%p281) target = $region52
        $region51: #{tpu_custom_call.1} parent=47 // pred_region
          %p284 = scmp.lt.s32.totalorder %s18, 1
          %s285 = scalar_select %p284, %s18, 1
          %s286 = smul.addr %s285, 4
          %s287 = smul.addr %s286, 8
          %s288 = scalar_lea.vmem %s0, %s287
        $region52: #{tpu_custom_call.1} parent=47 // pred_fallthru
          _
      $region48: #{tpu_custom_call.1} parent=5 // pred_fallthru
        _
      %p289 = scmp.le.s32.totalorder 1, %s18
      %p290 = scmp.lt.s32.totalorder %s18, 3
      %p291 = pnand %p289, %p290
      %p292 = pneg %p291
      // Predicated region
      $region53: #{tpu_custom_call.1} parent=5 // pred_check
        _
      $region54: #{tpu_custom_call.1} parent=5 // pred_check_branch
        %294 = sbr.rel (%p291) target = $region56
      $region55: #{tpu_custom_call.1} parent=5 // pred_region
        %s295 = ssub.s32 %s18, 1
        %p296 = scmp.lt.s32.totalorder %s23, 1
        %s297 = scalar_select %p296, %s23, 1
        %s298 = smul.addr %s297, 4
        %s299 = smul.addr %s298, 8
        %s300 = scalar_lea.vmem %s0, %s299
        %p301 = pneg %p44
        %p302 = pneg %p41
        %p303 = pneg %p65
        %p304 = pneg %p62
        %p305 = pneg %p86
        %p306 = pneg %p83
        %p307 = pneg %p107
        %p308 = pneg %p104
        %p309 = pneg %p128
        %p310 = pneg %p125
        %p311 = pneg %p149
        %p312 = pneg %p146
        %p313 = pneg %p170
        %p314 = pneg %p167
        %p315 = pneg %p191
        %p316 = pneg %p188
        %p317 = pneg %p212
        %p318 = pneg %p209
        %p319 = pneg %p238
        %p320 = pneg %p235
        %s321 = sand.u32 %s225, 1
        %s322 = scalar_lea.sflag [#allocation3], %s321
        %s323 = sand.u32 %s225, 1
        %s324 = scalar_lea.vmem [#allocation2], %s323
        %p325 = scmp.lt.s32.totalorder %s23, 1
        %s326 = scalar_select %p325, %s23, 1
        %s327 = smul.addr %s326, 4
        %s328 = smul.addr %s327, 8
        %s329 = scalar_lea.vmem %s0, %s328
        %v331 = vld [vmem:[%s329] sm:$0xff]
        %v332 = vld [vmem:[%s329 + $0x8] sm:$0xff]
        %v333 = vld [vmem:[%s329 + $0x10] sm:$0xff]
        %v334 = vld [vmem:[%s329 + $0x18] sm:$0xff]
        %335 = vxpose.xlu0.b32.start [1/16] %v331, 128
        %336 = vxpose.xlu0.b32.cont [2/16] %v332, 128
        %337 = vxpose.xlu0.b32.cont [3/16] %v333, 128
        %338 = vxpose.xlu0.b32.cont [4/16] %v334, 128
        %339 = vxpose.xlu0.b32.cont [5/16] 0.0, 128
        %340 = vxpose.xlu0.b32.cont [6/16] 0.0, 128
        %341 = vxpose.xlu0.b32.cont [7/16] 0.0, 128
        %342 = vxpose.xlu0.b32.cont [8/16] 0.0, 128
        %343 = vxpose.xlu0.b32.cont [9/16] 0.0, 128
        %344 = vxpose.xlu0.b32.cont [10/16] 0.0, 128
        %345 = vxpose.xlu0.b32.cont [11/16] 0.0, 128
        %346 = vxpose.xlu0.b32.cont [12/16] 0.0, 128
        %347 = vxpose.xlu0.b32.cont [13/16] 0.0, 128
        %348 = vxpose.xlu0.b32.cont [14/16] 0.0, 128
        %349 = vxpose.xlu0.b32.cont [15/16] 0.0, 128
        %350 = vxpose.xlu0.b32.end [16/16] 0.0, 128
        %v351 = vpop.trf.xlu0
        %v352 = vpop.trf.xlu0
        %v353 = vpop.trf.xlu0
        %v354 = vpop.trf.xlu0
        %v355 = vpop.trf.xlu0
        %v356 = vpop.trf.xlu0
        %v357 = vpop.trf.xlu0
        %v358 = vpop.trf.xlu0
        %v359 = vpop.trf.xlu0
        %v360 = vpop.trf.xlu0
        %v361 = vpop.trf.xlu0
        %v362 = vpop.trf.xlu0
        %v363 = vpop.trf.xlu0
        %v364 = vpop.trf.xlu0
        %v365 = vpop.trf.xlu0
        %v366 = vpop.trf.xlu0
        %vm367 = vcmask 261120
        %v368 = vsel %vm367, %v351, 0.0
        %v369 = vsel %vm367, %v352, 0.0
        %v370 = vadd.f32 %v368, %v369
        %v371 = vrot.slane %v370, 4
        %v372 = vadd.f32 %v370, %v371
        %v373 = vrot.slane %v372, 2
        %v374 = vadd.f32 %v372, %v373
        %v375 = vrot.slane %v374, 1
        %v376 = vadd.f32 %v374, %v375
        %v377 = vmul.f32 %v376, 0.0625
        %v378 = vld [vmem:[%s1] sm:$0x1]
        %v379 = vadd.f32 %v377, %v378
        %v380 = vld [vmem:[%s2] sm:$0xff]
        %v381 = vld [vmem:[%s2 + $0x8] sm:$0xff]
        %v382 = vadd.f32 %v351, %v380
        %v383 = vadd.f32 %v352, %v381
        %v384 = vld [vmem:[%s3] sm:$0xf]
        %v385 = vld [vmem:[%s3 + $0x4] sm:$0xf]
        %v386 = vld [vmem:[%s3 + $0x8] sm:$0xf]
        %v387 = vld [vmem:[%s3 + $0xc] sm:$0xf]
        %v388 = vld [vmem:[%s4] sm:$0x1]
        %v389 = vpack.c.bf16 %v379, %v379
        %v394 = vunpack.c.l.b16 %v384
        %v395 = vunpack.c.l.b16 %v385
        %v396 = vunpack.c.l.b16 %v386
        %v397 = vunpack.c.l.b16 %v387
        %v398 = vpack.c.b16 %v395, %v394
        %v399 = vpack.c.b16 %v397, %v396
        %v403 = vsel %vm367, %v389, 0
        %405 = vmatprep.subr.bf16.mxu0 0
        %406 = vmatpush1.bf16.msra.mxu0 0
        %407 = vmatprep.subr.bf16.mxu0 0
        %408 = vmatpush1.bf16.msra.mxu0 0
        %409 = vmatprep.subr.bf16.mxu0 0
        %410 = vmatpush1.bf16.msra.mxu0 0
        %411 = vmatprep.subr.bf16.mxu0 0
        %412 = vmatpush1.bf16.msra.mxu0 0
        %413 = vmatprep.subr.bf16.mxu0 0
        %414 = vmatpush1.bf16.msra.mxu0 0
        %415 = vmatprep.subr.bf16.mxu0 0
        %416 = vmatpush1.bf16.msra.mxu0 0
        %417 = vmatprep.subr.bf16.mxu0 0
        %418 = vmatpush1.bf16.msra.mxu0 %v399
        %419 = vmatprep.subr.bf16.mxu0 0
        %420 = vmatpush1.bf16.msra.mxu0 %v398
        %421 = vmatprep.subr.bf16.mxu0 0
        %422 = vmatpush2.bf16.msra.mxu0 0
        %423 = vmatprep.subr.bf16.mxu0 0
        %424 = vmatpush2.bf16.msra.mxu0 0
        %425 = vmatprep.subr.bf16.mxu0 0
        %426 = vmatpush2.bf16.msra.mxu0 0
        %427 = vmatprep.subr.bf16.mxu0 0
        %428 = vmatpush2.bf16.msra.mxu0 0
        %429 = vmatprep.subr.bf16.mxu0 0
        %430 = vmatpush2.bf16.msra.mxu0 0
        %431 = vmatprep.subr.bf16.mxu0 0
        %432 = vmatpush2.bf16.msra.mxu0 0
        %433 = vmatprep.subr.bf16.mxu0 0
        %434 = vmatpush2.bf16.msra.mxu0 0
        %435 = vmatprep.subr.bf16.mxu0 0
        %436 = vmatpush2.bf16.msra.mxu0 0
        %437 = vmatprep.mubr.bf16.mxu0 0
        %438 = vmatmul.mubr.bf16.gmra.mxu0 %v403
        %v439 = vpop.f32.mrf.mxu0
        %v440 = vadd.f32 %v388, %v439
        %v441 = vpop.f32.mrf.mxu0
        %v442 = vpop.f32.mrf.mxu0
        %v443 = vpop.f32.mrf.mxu0
        %444 = vdwg.mxu0
        %v445 = vmul.f32 %v440, 0.35355338
        %v446 = vpack.c.bf16 %v383, %v382
        %v448 = vlaneseq
        %v449 = vshrl.u32 %v448, 7
        %v450 = vsub.s32 0, %v449
        %v451 = vrot.slane %v388, %v450
        %452 = vrot.lane.b32.xlu0 %v398, 96
        %v453 = vpop.permute.xlu0 %452
        %454 = vrot.lane.b32.xlu0 %v399, 96
        %v455 = vpop.permute.xlu0 %454
        %458 = vrot.lane.b32.xlu0 %v451, 96
        %v459 = vpop.permute.xlu0 %458
        %v462 = vsel %vm367, %v446, 0
        %464 = vmatprep.subr.bf16.mxu0 0
        %465 = vmatpush1.bf16.msra.mxu0 0
        %466 = vmatprep.subr.bf16.mxu0 0
        %467 = vmatpush1.bf16.msra.mxu0 0
        %468 = vmatprep.subr.bf16.mxu0 0
        %469 = vmatpush1.bf16.msra.mxu0 0
        %470 = vmatprep.subr.bf16.mxu0 0
        %471 = vmatpush1.bf16.msra.mxu0 0
        %472 = vmatprep.subr.bf16.mxu0 0
        %473 = vmatpush1.bf16.msra.mxu0 0
        %474 = vmatprep.subr.bf16.mxu0 0
        %475 = vmatpush1.bf16.msra.mxu0 0
        %476 = vmatprep.subr.bf16.mxu0 0
        %477 = vmatpush1.bf16.msra.mxu0 %v455
        %478 = vmatprep.subr.bf16.mxu0 0
        %479 = vmatpush1.bf16.msra.mxu0 %v453
        %480 = vmatprep.subr.bf16.mxu0 0
        %481 = vmatpush2.bf16.msra.mxu0 0
        %482 = vmatprep.subr.bf16.mxu0 0
        %483 = vmatpush2.bf16.msra.mxu0 0
        %484 = vmatprep.subr.bf16.mxu0 0
        %485 = vmatpush2.bf16.msra.mxu0 0
        %486 = vmatprep.subr.bf16.mxu0 0
        %487 = vmatpush2.bf16.msra.mxu0 0
        %488 = vmatprep.subr.bf16.mxu0 0
        %489 = vmatpush2.bf16.msra.mxu0 0
        %490 = vmatprep.subr.bf16.mxu0 0
        %491 = vmatpush2.bf16.msra.mxu0 0
        %492 = vmatprep.subr.bf16.mxu0 0
        %493 = vmatpush2.bf16.msra.mxu0 0
        %494 = vmatprep.subr.bf16.mxu0 0
        %495 = vmatpush2.bf16.msra.mxu0 0
        %496 = vmatprep.mubr.bf16.mxu0 0
        %497 = vmatmul.mubr.bf16.gmra.mxu0 %v462
        %v498 = vpop.f32.mrf.mxu0
        %v499 = vadd.f32 %v459, %v498
        %v500 = vpop.f32.mrf.mxu0
        %v501 = vpop.f32.mrf.mxu0
        %v502 = vadd.f32 %v459, %v501
        %v503 = vpop.f32.mrf.mxu0
        %504 = vdwg.mxu0
        %v505 = vld [vmem:[%s7] sm:$0xf]
        %v506 = vld [vmem:[%s7 + $0x4] sm:$0xf]
        %v507 = vld [vmem:[%s7 + $0x8] sm:$0xf]
        %v508 = vld [vmem:[%s7 + $0xc] sm:$0xf]
        %v509 = vld [vmem:[%s8] sm:$0x3]
        %511 = vrot.lane.b32.xlu0 %v440, 96
        %v512 = vpop.permute.xlu0 %511
        %v514 = vmul.f32 %v445, %v512
        %v515 = vpack.c.bf16 %v514, %v514
        %v520 = vunpack.c.l.b16 %v505
        %v521 = vunpack.c.l.b16 %v506
        %v522 = vunpack.c.l.b16 %v507
        %v523 = vunpack.c.l.b16 %v508
        %v524 = vpack.c.b16 %v521, %v520
        %v525 = vpack.c.b16 %v523, %v522
        %v529 = vsel %vm367, %v515, 0
        %531 = vmatprep.subr.bf16.mxu0 0
        %532 = vmatpush1.bf16.msra.mxu0 0
        %533 = vmatprep.subr.bf16.mxu0 0
        %534 = vmatpush1.bf16.msra.mxu0 0
        %535 = vmatprep.subr.bf16.mxu0 0
        %536 = vmatpush1.bf16.msra.mxu0 0
        %537 = vmatprep.subr.bf16.mxu0 0
        %538 = vmatpush1.bf16.msra.mxu0 0
        %539 = vmatprep.subr.bf16.mxu0 0
        %540 = vmatpush1.bf16.msra.mxu0 0
        %541 = vmatprep.subr.bf16.mxu0 0
        %542 = vmatpush1.bf16.msra.mxu0 0
        %543 = vmatprep.subr.bf16.mxu0 0
        %544 = vmatpush1.bf16.msra.mxu0 %v525
        %545 = vmatprep.subr.bf16.mxu0 0
        %546 = vmatpush1.bf16.msra.mxu0 %v524
        %547 = vmatprep.subr.bf16.mxu0 0
        %548 = vmatpush2.bf16.msra.mxu0 0
        %549 = vmatprep.subr.bf16.mxu0 0
        %550 = vmatpush2.bf16.msra.mxu0 0
        %551 = vmatprep.subr.bf16.mxu0 0
        %552 = vmatpush2.bf16.msra.mxu0 0
        %553 = vmatprep.subr.bf16.mxu0 0
        %554 = vmatpush2.bf16.msra.mxu0 0
        %555 = vmatprep.subr.bf16.mxu0 0
        %556 = vmatpush2.bf16.msra.mxu0 0
        %557 = vmatprep.subr.bf16.mxu0 0
        %558 = vmatpush2.bf16.msra.mxu0 0
        %559 = vmatprep.subr.bf16.mxu0 0
        %560 = vmatpush2.bf16.msra.mxu0 0
        %561 = vmatprep.subr.bf16.mxu0 0
        %562 = vmatpush2.bf16.msra.mxu0 0
        %563 = vmatprep.mubr.bf16.mxu0 0
        %564 = vmatmul.mubr.bf16.gmra.mxu0 %v529
        %v565 = vpop.f32.mrf.mxu0
        %v566 = vadd.f32 0.0, %v565
        %v567 = vpop.f32.mrf.mxu0
        %v568 = vpop.f32.mrf.mxu0
        %v569 = vpop.f32.mrf.mxu0
        %570 = vdwg.mxu0
        %v571 = vlaneseq
        %v572 = vshrl.u32 %v571, 7
        %v573 = vsub.s32 0, %v572
        %v574 = vrot.slane %v445, %v573
        %v575 = vmul.f32 %v574, %v499
        %v576 = vmul.f32 %v574, %v502
        %v577 = vpack.c.bf16 %v576, %v575
        %v579 = vsel %vm367, %v577, 0
        %581 = vmatprep.subr.bf16.mxu0 0
        %582 = vmatpush1.bf16.msra.mxu0 0
        %583 = vmatprep.subr.bf16.mxu0 0
        %584 = vmatpush1.bf16.msra.mxu0 0
        %585 = vmatprep.subr.bf16.mxu0 0
        %586 = vmatpush1.bf16.msra.mxu0 0
        %587 = vmatprep.subr.bf16.mxu0 0
        %588 = vmatpush1.bf16.msra.mxu0 0
        %589 = vmatprep.subr.bf16.mxu0 0
        %590 = vmatpush1.bf16.msra.mxu0 0
        %591 = vmatprep.subr.bf16.mxu0 0
        %592 = vmatpush1.bf16.msra.mxu0 0
        %593 = vmatprep.subr.bf16.mxu0 0
        %594 = vmatpush1.bf16.msra.mxu0 %v525
        %595 = vmatprep.subr.bf16.mxu0 0
        %596 = vmatpush1.bf16.msra.mxu0 %v524
        %597 = vmatprep.subr.bf16.mxu0 0
        %598 = vmatpush2.bf16.msra.mxu0 0
        %599 = vmatprep.subr.bf16.mxu0 0
        %600 = vmatpush2.bf16.msra.mxu0 0
        %601 = vmatprep.subr.bf16.mxu0 0
        %602 = vmatpush2.bf16.msra.mxu0 0
        %603 = vmatprep.subr.bf16.mxu0 0
        %604 = vmatpush2.bf16.msra.mxu0 0
        %605 = vmatprep.subr.bf16.mxu0 0
        %606 = vmatpush2.bf16.msra.mxu0 0
        %607 = vmatprep.subr.bf16.mxu0 0
        %608 = vmatpush2.bf16.msra.mxu0 0
        %609 = vmatprep.subr.bf16.mxu0 0
        %610 = vmatpush2.bf16.msra.mxu0 0
        %611 = vmatprep.subr.bf16.mxu0 0
        %612 = vmatpush2.bf16.msra.mxu0 0
        %613 = vmatprep.mubr.bf16.mxu0 0
        %614 = vmatmul.mubr.bf16.gmra.mxu0 %v579
        %v615 = vpop.f32.mrf.mxu0
        %v616 = vadd.f32 0.0, %v615
        %v617 = vpop.f32.mrf.mxu0
        %v618 = vpop.f32.mrf.mxu0
        %v619 = vadd.f32 0.0, %v618
        %v620 = vpop.f32.mrf.mxu0
        %621 = vdwg.mxu0
        %vm622 = vcmask 31744
        %v623 = vsel %vm622, %v616, -inf
        %v624 = vsel %vm622, %v619, -inf
        %v625 = vmax.f32 %v623, %v624
        %v626 = vrot.slane %v625, 4
        %v627 = vmax.f32 %v625, %v626
        %v628 = vrot.slane %v627, 2
        %v629 = vmax.f32 %v627, %v628
        %v630 = vrot.slane %v629, 1
        %v631 = vmax.f32 %v629, %v630
        %v632 = vmax.f32 %v631, %v566
        %v633 = vsub.f32 %v566, %v632
        %v634 = vmul.f32 %v633, 1.442695
        %v635 = vpow.pop %v634
        %v636 = vlaneseq
        %v637 = vshrl.u32 %v636, 7
        %v638 = vsub.s32 0, %v637
        %v639 = vrot.slane %v632, %v638
        %v640 = vsub.f32 %v616, %v639
        %v641 = vsub.f32 %v619, %v639
        %v642 = vmul.f32 %v640, 1.442695
        %v643 = vpow.pop %v642
        %v644 = vmul.f32 %v641, 1.442695
        %v645 = vpow.pop %v644
        %v646 = vsel %vm622, %v643, 0.0
        %v647 = vsel %vm622, %v645, 0.0
        %v648 = vadd.f32 %v646, %v647
        %v649 = vrot.slane %v648, 4
        %v650 = vadd.f32 %v648, %v649
        %v651 = vrot.slane %v650, 2
        %v652 = vadd.f32 %v650, %v651
        %v653 = vrot.slane %v652, 1
        %v654 = vadd.f32 %v652, %v653
        %v655 = vadd.f32 %v635, %v654
        %v656 = vrcp.pop %v655
        %v657 = vmul.f32 %v635, %v656
        %v658 = vlaneseq
        %v659 = vshrl.u32 %v658, 7
        %v660 = vsub.s32 0, %v659
        %v661 = vrot.slane %v656, %v660
        %v662 = vmul.f32 %v643, %v661
        %v663 = vmul.f32 %v645, %v661
        %v664 = vpack.c.bf16 %v657, %v657
        %v666 = vsel %vm622, %v664, 0
        %vm668 = vcmask 1041408
        %v670 = vsel %vm668, %v509, 0
        %672 = vmatprep.subr.bf16.mxu0 0
        %673 = vmatpush1.bf16.msra.mxu0 0
        %674 = vmatprep.subr.bf16.mxu0 0
        %675 = vmatpush1.bf16.msra.mxu0 0
        %676 = vmatprep.subr.bf16.mxu0 0
        %677 = vmatpush1.bf16.msra.mxu0 0
        %678 = vmatprep.subr.bf16.mxu0 0
        %679 = vmatpush1.bf16.msra.mxu0 0
        %680 = vmatprep.subr.bf16.mxu0 0
        %681 = vmatpush1.bf16.msra.mxu0 0
        %682 = vmatprep.subr.bf16.mxu0 0
        %683 = vmatpush1.bf16.msra.mxu0 0
        %684 = vmatprep.subr.bf16.mxu0 0
        %685 = vmatpush1.bf16.msra.mxu0 0
        %686 = vmatprep.subr.bf16.mxu0 0
        %687 = vmatpush1.bf16.msra.mxu0 %v670
        %688 = vmatprep.subr.bf16.mxu0 0
        %689 = vmatpush2.bf16.msra.mxu0 0
        %690 = vmatprep.subr.bf16.mxu0 0
        %691 = vmatpush2.bf16.msra.mxu0 0
        %692 = vmatprep.subr.bf16.mxu0 0
        %693 = vmatpush2.bf16.msra.mxu0 0
        %694 = vmatprep.subr.bf16.mxu0 0
        %695 = vmatpush2.bf16.msra.mxu0 0
        %696 = vmatprep.subr.bf16.mxu0 0
        %697 = vmatpush2.bf16.msra.mxu0 0
        %698 = vmatprep.subr.bf16.mxu0 0
        %699 = vmatpush2.bf16.msra.mxu0 0
        %700 = vmatprep.subr.bf16.mxu0 0
        %701 = vmatpush2.bf16.msra.mxu0 0
        %702 = vmatprep.subr.bf16.mxu0 0
        %703 = vmatpush2.bf16.msra.mxu0 0
        %704 = vmatprep.mubr.bf16.mxu0 0
        %705 = vmatmul.mubr.bf16.gmra.mxu0 %v666
        %v706 = vpop.f32.mrf.mxu0
        %v707 = vadd.f32 0.0, %v706
        %v708 = vpop.f32.mrf.mxu0
        %v709 = vpop.f32.mrf.mxu0
        %v710 = vpop.f32.mrf.mxu0
        %711 = vdwg.mxu0
        %v712 = vpack.c.bf16 %v663, %v662
        %v714 = vsel %vm622, %v712, 0
        %716 = vmatprep.subr.bf16.mxu0 0
        %717 = vmatpush1.bf16.msra.mxu0 0
        %718 = vmatprep.subr.bf16.mxu0 0
        %719 = vmatpush1.bf16.msra.mxu0 0
        %720 = vmatprep.subr.bf16.mxu0 0
        %721 = vmatpush1.bf16.msra.mxu0 0
        %722 = vmatprep.subr.bf16.mxu0 0
        %723 = vmatpush1.bf16.msra.mxu0 0
        %724 = vmatprep.subr.bf16.mxu0 0
        %725 = vmatpush1.bf16.msra.mxu0 0
        %726 = vmatprep.subr.bf16.mxu0 0
        %727 = vmatpush1.bf16.msra.mxu0 0
        %728 = vmatprep.subr.bf16.mxu0 0
        %729 = vmatpush1.bf16.msra.mxu0 0
        %730 = vmatprep.subr.bf16.mxu0 0
        %731 = vmatpush1.bf16.msra.mxu0 %v670
        %732 = vmatprep.subr.bf16.mxu0 0
        %733 = vmatpush2.bf16.msra.mxu0 0
        %734 = vmatprep.subr.bf16.mxu0 0
        %735 = vmatpush2.bf16.msra.mxu0 0
        %736 = vmatprep.subr.bf16.mxu0 0
        %737 = vmatpush2.bf16.msra.mxu0 0
        %738 = vmatprep.subr.bf16.mxu0 0
        %739 = vmatpush2.bf16.msra.mxu0 0
        %740 = vmatprep.subr.bf16.mxu0 0
        %741 = vmatpush2.bf16.msra.mxu0 0
        %742 = vmatprep.subr.bf16.mxu0 0
        %743 = vmatpush2.bf16.msra.mxu0 0
        %744 = vmatprep.subr.bf16.mxu0 0
        %745 = vmatpush2.bf16.msra.mxu0 0
        %746 = vmatprep.subr.bf16.mxu0 0
        %747 = vmatpush2.bf16.msra.mxu0 0
        %748 = vmatprep.mubr.bf16.mxu0 0
        %749 = vmatmul.mubr.bf16.gmra.mxu0 %v714
        %v750 = vpop.f32.mrf.mxu0
        %v751 = vadd.f32 0.0, %v750
        %v752 = vpop.f32.mrf.mxu0
        %v753 = vpop.f32.mrf.mxu0
        %v754 = vadd.f32 0.0, %v753
        %v755 = vpop.f32.mrf.mxu0
        %756 = vdwg.mxu0
        %757 = vrot.lane.b32.xlu0 %v440, 64
        %v758 = vpop.permute.xlu0 %757
        %v760 = vmul.f32 %v707, %v758
        %763 = vrot.lane.b32.xlu0 %v499, 96
        %v764 = vpop.permute.xlu0 %763
        %765 = vrot.lane.b32.xlu0 %v502, 96
        %v766 = vpop.permute.xlu0 %765
        %v769 = vmul.f32 %v751, %v764
        %v770 = vmul.f32 %v754, %v766
        %v771 = vsel %vm367, %v769, 0.0
        %v772 = vsel %vm367, %v770, 0.0
        %v773 = vadd.f32 %v771, %v772
        %v774 = vrot.slane %v773, 4
        %v775 = vadd.f32 %v773, %v774
        %v776 = vrot.slane %v775, 2
        %v777 = vadd.f32 %v775, %v776
        %v778 = vrot.slane %v777, 1
        %v779 = vadd.f32 %v777, %v778
        %v780 = vadd.f32 %v760, %v779
        %v781 = vpack.c.bf16 %v780, %v780
        %v782 = vld [vmem:[%s5] sm:$0xf]
        %v783 = vld [vmem:[%s5 + $0x4] sm:$0xf]
        %v784 = vld [vmem:[%s5 + $0x8] sm:$0xf]
        %v785 = vld [vmem:[%s5 + $0xc] sm:$0xf]
        %v786 = vld [vmem:[%s6] sm:$0x1]
        %v791 = vunpack.c.l.b16 %v782
        %v792 = vunpack.c.l.b16 %v783
        %v793 = vunpack.c.l.b16 %v784
        %v794 = vunpack.c.l.b16 %v785
        %v795 = vpack.c.b16 %v792, %v791
        %v796 = vpack.c.b16 %v794, %v793
        %v800 = vsel %vm367, %v781, 0
        %802 = vmatprep.subr.bf16.mxu0 0
        %803 = vmatpush1.bf16.msra.mxu0 0
        %804 = vmatprep.subr.bf16.mxu0 0
        %805 = vmatpush1.bf16.msra.mxu0 0
        %806 = vmatprep.subr.bf16.mxu0 0
        %807 = vmatpush1.bf16.msra.mxu0 0
        %808 = vmatprep.subr.bf16.mxu0 0
        %809 = vmatpush1.bf16.msra.mxu0 0
        %810 = vmatprep.subr.bf16.mxu0 0
        %811 = vmatpush1.bf16.msra.mxu0 0
        %812 = vmatprep.subr.bf16.mxu0 0
        %813 = vmatpush1.bf16.msra.mxu0 0
        %814 = vmatprep.subr.bf16.mxu0 0
        %815 = vmatpush1.bf16.msra.mxu0 %v796
        %816 = vmatprep.subr.bf16.mxu0 0
        %817 = vmatpush1.bf16.msra.mxu0 %v795
        %818 = vmatprep.subr.bf16.mxu0 0
        %819 = vmatpush2.bf16.msra.mxu0 0
        %820 = vmatprep.subr.bf16.mxu0 0
        %821 = vmatpush2.bf16.msra.mxu0 0
        %822 = vmatprep.subr.bf16.mxu0 0
        %823 = vmatpush2.bf16.msra.mxu0 0
        %824 = vmatprep.subr.bf16.mxu0 0
        %825 = vmatpush2.bf16.msra.mxu0 0
        %826 = vmatprep.subr.bf16.mxu0 0
        %827 = vmatpush2.bf16.msra.mxu0 0
        %828 = vmatprep.subr.bf16.mxu0 0
        %829 = vmatpush2.bf16.msra.mxu0 0
        %830 = vmatprep.subr.bf16.mxu0 0
        %831 = vmatpush2.bf16.msra.mxu0 0
        %832 = vmatprep.subr.bf16.mxu0 0
        %833 = vmatpush2.bf16.msra.mxu0 0
        %834 = vmatprep.mubr.bf16.mxu0 0
        %835 = vmatmul.mubr.bf16.gmra.mxu0 %v800
        %v836 = vpop.f32.mrf.mxu0
        %v837 = vadd.f32 %v786, %v836
        %v838 = vpop.f32.mrf.mxu0
        %v839 = vpop.f32.mrf.mxu0
        %v840 = vpop.f32.mrf.mxu0
        %841 = vdwg.mxu0
        %842 = vst [vmem:[%s324] sm:$0x1] %v837
        %s843 = sand.u32 %s225, 1
        %s844 = scalar_lea.sflag [#allocation3], %s843
        %s845 = sand.u32 %s225, 1
        %s846 = scalar_lea.vmem [#allocation2], %s845
        // Predicated region
        $region57: #{tpu_custom_call.1} parent=55 // pred_check
          %p847 = pneg %p235
        $region58: #{tpu_custom_call.1} parent=55 // pred_check_branch
          %849 = sbr.rel (%p847) target = $region60
        $region59: #{tpu_custom_call.1} parent=55 // pred_region
          %s851 = ssub.s32 16, 16
          %852 = vsyncadd %s844, %s851
          %s853 = smul.addr %s23, 16
          %s854 = scalar_lea.hbm %s9, %s853
          %s856 = sshll.u32 %s846, 4
          %s857 = int_to_ptr.vmem [resolvable:$true] %s856
          %859 = dma.vmem_to_hbm [thread:$0]  %s857, 16, %s854, %s844
        $region60: #{tpu_custom_call.1} parent=55 // pred_fallthru
          _
      $region56: #{tpu_custom_call.1} parent=5 // pred_fallthru
        _
      %p860 = scmp.le.s32.totalorder 2, %s18
      // Predicated region
      $region61: #{tpu_custom_call.1} parent=5 // pred_check
        %p861 = pneg %p860
      $region62: #{tpu_custom_call.1} parent=5 // pred_check_branch
        %863 = sbr.rel (%p861) target = $region64
      $region63: #{tpu_custom_call.1} parent=5 // pred_region
        %s864 = ssub.s32 %s18, 2
        // Predicated region
        $region65: #{tpu_custom_call.1} parent=63 // pred_check
          %p865 = pneg %p241
        $region66: #{tpu_custom_call.1} parent=63 // pred_check_branch
          %867 = sbr.rel (%p865) target = $region68
        $region67: #{tpu_custom_call.1} parent=63 // pred_region
          %s868 = sand.u32 %s226, 1
          %s869 = scalar_lea.sflag [#allocation3], %s868
          %s870 = sand.u32 %s226, 1
          %s871 = scalar_lea.vmem [#allocation2], %s870
          %872 = dma.done %s869, 16
        $region68: #{tpu_custom_call.1} parent=63 // pred_fallthru
          _
      $region64: #{tpu_custom_call.1} parent=5 // pred_fallthru
        _
    $region6: #{tpu_custom_call.1} parent=1 // loop_footer
      %s22 = sadd.s32 1, %s18
    $region7: #{tpu_custom_call.1} parent=1 // loop_footer_branch
      %17 = sbr.rel target = $region3
    $region8: #{tpu_custom_call.1} parent=1 // loop_exit
      _
    %873 = vsyncpa [#allocation3], 1
    %s874 = scalar_lea.sflag [#allocation3], 1
    %875 = vsyncpa %s874, 1

</llo_original>
